<compile_context>
chip_gen: v7x
topology: tpu7x:2x2x1
jax: 0.10.0
libtpu: 0.0.40
codegen_flags: <defaults>
</compile_context>

<pallas_src>
import math

import jax
import jax.numpy as jnp
from jax.experimental import pallas as pl
from jax.experimental.pallas import tpu as pltpu


def _round_up(x, m):
    return ((x + m - 1) // m) * m


def _base_reward_kernel_scalar(x_ref, w1_ref, b1_ref, w2_ref, b2_ref,
                               w3_ref, b3_ref, wl_ref, bl_ref, out_ref):
    """One batch tile, output_dim == 1.

    3x (MXU matmul + f32 bias + ReLU).  The final 1-column linear layer is folded
    into a VPU broadcast-multiply + lane reduce so no MXU cycles / wide stores are
    spent producing a single scalar per row."""
    cd = w1_ref.dtype

    h = jnp.dot(x_ref[...], w1_ref[...], preferred_element_type=jnp.float32) + b1_ref[...]
    h = jnp.maximum(h, 0.0).astype(cd)

    h = jnp.dot(h, w2_ref[...], preferred_element_type=jnp.float32) + b2_ref[...]
    h = jnp.maximum(h, 0.0).astype(cd)

    h = jnp.dot(h, w3_ref[...], preferred_element_type=jnp.float32) + b3_ref[...]
    # forward() applies F.relu again on the network output; h is already >= 0,
    # so this single maximum covers both.  Keep f32 for the final reduce.
    h = jnp.maximum(h, 0.0)

    # last_layer (out_dim == 1): per-row dot with the single weight column.
    res = jnp.sum(h * wl_ref[...], axis=-1, keepdims=True) + bl_ref[...]
    out_ref[...] = res.astype(out_ref.dtype)          # (bb, 1): 4 B/row writeback


def _base_reward_kernel_wide(x_ref, w1_ref, b1_ref, w2_ref, b2_ref,
                             w3_ref, b3_ref, wl_ref, bl_ref, out_ref):
    """One batch tile, output_dim > 1 (last layer zero-padded to a multiple of 128)."""
    cd = w1_ref.dtype

    h = jnp.dot(x_ref[...], w1_ref[...], preferred_element_type=jnp.float32) + b1_ref[...]
    h = jnp.maximum(h, 0.0).astype(cd)

    h = jnp.dot(h, w2_ref[...], preferred_element_type=jnp.float32) + b2_ref[...]
    h = jnp.maximum(h, 0.0).astype(cd)

    h = jnp.dot(h, w3_ref[...], preferred_element_type=jnp.float32) + b3_ref[...]
    h = jnp.maximum(h, 0.0).astype(cd)                # extra F.relu is a no-op

    out = jnp.dot(h, wl_ref[...], preferred_element_type=jnp.float32) + bl_ref[...]
    out_ref[...] = out.astype(out_ref.dtype)


def base_reward_forward(state, params, *, block_b=1024, compute_dtype=jnp.bfloat16):
    """Pallas equivalent of BaseRewardModel.forward.

    state:  (B, state_dim) float32
    params: (w1 (S,H), b1 (H,), w2 (H,H), b2 (H,), w3 (H,H), b3 (H,),
             w_last (H, out_dim), b_last (out_dim,))
    returns (B,) float32 when out_dim == 1 (matching .squeeze(-1)), else (B, out_dim).

    compute_dtype is the MXU operand dtype (bf16 default, f32 accumulation);
    pass jnp.float32 for exact parity with the PyTorch f32 forward.
    For best latency wrap this in jax.jit (static_argnames=("block_b","compute_dtype"))
    or pre-cast the weights once — the casts/pads here are plain XLA ops.
    """
    w1, b1, w2, b2, w3, b3, wl, bl = params
    B, S = state.shape
    H = w1.shape[1]
    out_dim = wl.shape[1]

    # --- batch tiling: big tiles, minimal padding, even grid for v7x megacore ---
    if B <= block_b:
        num_tiles = 1
        bb = _round_up(B, 16)
    else:
        num_tiles = pl.cdiv(B, block_b)
        if num_tiles % 2:                 # balanced split across the 2 v7x TCs
            num_tiles += 1
        bb = _round_up(pl.cdiv(B, num_tiles), 16)
    B_pad = num_tiles * bb
    x = state if B_pad == B else jnp.pad(state, ((0, B_pad - B), (0, 0)))

    # --- MXU operand dtype (biases / last column stay f32 for the adds) ---
    cd = compute_dtype
    x = x.astype(cd)
    w1c, w2c, w3c = (w.astype(cd) for w in (w1, w2, w3))
    b1r = b1.reshape(1, H).astype(jnp.float32)
    b2r = b2.reshape(1, H).astype(jnp.float32)
    b3r = b3.reshape(1, H).astype(jnp.float32)

    grid = (num_tiles,)
    full = lambda i: (0, 0)
    common_in_specs = [
        pl.BlockSpec((bb, S), lambda i: (i, 0)),   # state tile
        pl.BlockSpec((S, H), full),                # w1 (resident)
        pl.BlockSpec((1, H), full),                # b1
        pl.BlockSpec((H, H), full),                # w2
        pl.BlockSpec((1, H), full),                # b2
        pl.BlockSpec((H, H), full),                # w3
        pl.BlockSpec((1, H), full),                # b3
    ]
    # Resident weights + activations for bb=1024, H=512 (bf16) use ~10 MiB of VMEM.
    # For much larger hidden_dim, shrink block_b or tile the H reduction instead.
    cp = pltpu.CompilerParams(
        dimension_semantics=("parallel",),         # megacore split on v7x
        vmem_limit_bytes=48 * 1024 * 1024,
    )

    if out_dim == 1:
        wlr = wl.reshape(1, H).astype(jnp.float32)     # single column, kept exact in f32
        blr = bl.reshape(1, 1).astype(jnp.float32)
        out = pl.pallas_call(
            _base_reward_kernel_scalar,
            out_shape=jax.ShapeDtypeStruct((B_pad, 1), jnp.float32),
            grid=grid,
            in_specs=common_in_specs + [
                pl.BlockSpec((1, H), full),            # w_last column (as a row)
                pl.BlockSpec((1, 1), full),            # b_last scalar
            ],
            out_specs=pl.BlockSpec((bb, 1), lambda i: (i, 0)),
            compiler_params=cp,
        )(x, w1c, b1r, w2c, b2r, w3c, b3r, wlr, blr)
        return out[:B, 0]                              # matches torch .squeeze(-1)

    # --- general out_dim > 1: lane-dense padded last layer ---
    n_pad = _round_up(out_dim, 128)
    wl_p = jnp.zeros((H, n_pad), jnp.float32).at[:, :out_dim].set(
        wl.astype(jnp.float32)).astype(cd)
    bl_p = jnp.zeros((1, n_pad), jnp.float32).at[0, :out_dim].set(bl.astype(jnp.float32))
    out = pl.pallas_call(
        _base_reward_kernel_wide,
        out_shape=jax.ShapeDtypeStruct((B_pad, n_pad), jnp.float32),
        grid=grid,
        in_specs=common_in_specs + [
            pl.BlockSpec((H, n_pad), full),            # w_last (zero-padded)
            pl.BlockSpec((1, n_pad), full),            # b_last (zero-padded)
        ],
        out_specs=pl.BlockSpec((bb, n_pad), lambda i: (i, 0)),
        compiler_params=cp,
    )(x, w1c, b1r, w2c, b2r, w3c, b3r, wl_p, bl_p)
    return out[:B, :out_dim]


def init_params(key, state_dim, hidden_dim, output_dim=1):
    """PyTorch nn.Linear-style uniform(-1/sqrt(fan_in), 1/sqrt(fan_in)) init."""
    ks = jax.random.split(key, 8)

    def lin(kw, kb, fan_in, fan_out):
        bound = 1.0 / math.sqrt(fan_in)
        w = jax.random.uniform(kw, (fan_in, fan_out), jnp.float32, -bound, bound)
        b = jax.random.uniform(kb, (fan_out,), jnp.float32, -bound, bound)
        return w, b

    w1, b1 = lin(ks[0], ks[1], state_dim, hidden_dim)
    w2, b2 = lin(ks[2], ks[3], hidden_dim, hidden_dim)
    w3, b3 = lin(ks[4], ks[5], hidden_dim, hidden_dim)
    wl, bl = lin(ks[6], ks[7], hidden_dim, output_dim)
    return (w1, b1, w2, b2, w3, b3, wl, bl)


def reference_forward(state, params):
    """Pure-JAX reference mirroring the PyTorch module exactly."""
    w1, b1, w2, b2, w3, b3, wl, bl = params
    h = jnp.maximum(state @ w1 + b1, 0.0)
    h = jnp.maximum(h @ w2 + b2, 0.0)
    h = jnp.maximum(h @ w3 + b3, 0.0)
    h = jnp.maximum(h, 0.0)          # F.relu in forward (no-op)
    out = h @ wl + bl
    if out.shape[-1] == 1:
        out = out[..., 0]            # .squeeze(-1)
    return out


if __name__ == "__main__":
    # Small shapes consistent with the module (module defaults use hidden=512).
    B, STATE_DIM, HIDDEN, OUT_DIM = 16, 16, 128, 1

    key = jax.random.PRNGKey(0)
    k_params, k_state = jax.random.split(key)
    params = init_params(k_params, STATE_DIM, HIDDEN, OUT_DIM)
    state = jax.random.normal(k_state, (B, STATE_DIM), dtype=jnp.float32)
    ref = reference_forward(state, params)

    fwd = jax.jit(base_reward_forward, static_argnames=("block_b", "compute_dtype"))

    # Default bf16 MXU path (f32 accumulation) -> looser tolerance.
    out = jax.block_until_ready(fwd(state, params))
    assert out.shape == (B,)
    assert jnp.allclose(out, ref, atol=5e-2, rtol=5e-2), "Pallas kernel mismatch (bf16)"

    # Exact f32 path.
    out_f32 = jax.block_until_ready(fwd(state, params, compute_dtype=jnp.float32))
    assert jnp.allclose(out_f32, ref, atol=1e-4, rtol=1e-4), "Pallas kernel mismatch (f32)"

    # Ragged batch (not a multiple of the tile) exercises wrapper-side padding.
    out_r = jax.block_until_ready(fwd(state[:10], params))
    assert out_r.shape == (10,)
    assert jnp.allclose(out_r, ref[:10], atol=5e-2, rtol=5e-2), "ragged batch mismatch"

    # output_dim > 1 fallback kernel (padded lane-dense last layer), exact f32.
    params4 = init_params(k_params, STATE_DIM, HIDDEN, 4)
    ref4 = reference_forward(state, params4)
    out4 = jax.block_until_ready(fwd(state, params4, compute_dtype=jnp.float32))
    assert out4.shape == (B, 4)
    assert jnp.allclose(out4, ref4, atol=1e-4, rtol=1e-4), "wide-output mismatch (f32)"

    print("KERNEL_OK")
</pallas_src>

<mosaic_0001>
module attributes {stable_mosaic.version = 11 : i64} {
  func.func @_base_reward_kernel_scalar(%arg0: i32, %arg1: memref<16x16xbf16, #tpu.memory_space<vmem>>, %arg2: memref<16x128xbf16, #tpu.memory_space<vmem>>, %arg3: memref<1x128xf32, #tpu.memory_space<vmem>>, %arg4: memref<128x128xbf16, #tpu.memory_space<vmem>>, %arg5: memref<1x128xf32, #tpu.memory_space<vmem>>, %arg6: memref<128x128xbf16, #tpu.memory_space<vmem>>, %arg7: memref<1x128xf32, #tpu.memory_space<vmem>>, %arg8: memref<1x128xf32, #tpu.memory_space<vmem>>, %arg9: memref<1x1xf32, #tpu.memory_space<vmem>>, %arg10: memref<16x1xf32, #tpu.memory_space<vmem>>) attributes {dimension_semantics = [#tpu.dimension_semantics<parallel>], iteration_bounds = array<i64: 1>, scalar_prefetch = 0 : i64, scratch_operands = 0 : i64, tpu.core_type = #tpu.core_type<tc>, window_params = [{transform_indices = @transform_0, window_bounds = array<i64: 16, 16>}, {pipeline_mode = #tpu.pipeline_mode<synchronous>, transform_indices = @transform_1, window_bounds = array<i64: 16, 128>}, {pipeline_mode = #tpu.pipeline_mode<synchronous>, transform_indices = @transform_2, window_bounds = array<i64: 1, 128>}, {pipeline_mode = #tpu.pipeline_mode<synchronous>, transform_indices = @transform_3, window_bounds = array<i64: 128, 128>}, {pipeline_mode = #tpu.pipeline_mode<synchronous>, transform_indices = @transform_4, window_bounds = array<i64: 1, 128>}, {pipeline_mode = #tpu.pipeline_mode<synchronous>, transform_indices = @transform_5, window_bounds = array<i64: 128, 128>}, {pipeline_mode = #tpu.pipeline_mode<synchronous>, transform_indices = @transform_6, window_bounds = array<i64: 1, 128>}, {pipeline_mode = #tpu.pipeline_mode<synchronous>, transform_indices = @transform_7, window_bounds = array<i64: 1, 128>}, {pipeline_mode = #tpu.pipeline_mode<synchronous>, transform_indices = @transform_8, window_bounds = array<i64: 1, 1>}, {transform_indices = @transform_9, window_bounds = array<i64: 16, 1>}]} {
    %c0 = arith.constant 0 : index
    %c0_0 = arith.constant 0 : index
    %0 = vector.load %arg1[%c0, %c0_0] : memref<16x16xbf16, #tpu.memory_space<vmem>>, vector<16x16xbf16>
    %c0_1 = arith.constant 0 : index
    %c0_2 = arith.constant 0 : index
    %1 = vector.load %arg2[%c0_1, %c0_2] : memref<16x128xbf16, #tpu.memory_space<vmem>>, vector<16x128xbf16>
    %cst = arith.constant dense<0.000000e+00> : vector<16x128xf32>
    %2 = tpu.matmul %0, %1, %cst {dimension_numbers = #tpu.dot_dimension_numbers<[1], [0], [0], [1], [0, 0, 1, 1], [], []>} : vector<16x16xbf16>, vector<16x128xbf16>, vector<16x128xf32> -> vector<16x128xf32>
    %c0_3 = arith.constant 0 : index
    %c0_4 = arith.constant 0 : index
    %3 = vector.load %arg3[%c0_3, %c0_4] : memref<1x128xf32, #tpu.memory_space<vmem>>, vector<1x128xf32>
    %4 = vector.broadcast %3 : vector<1x128xf32> to vector<16x128xf32>
    %5 = arith.addf %2, %4 : vector<16x128xf32>
    %cst_5 = arith.constant 0.000000e+00 : f32
    %6 = vector.broadcast %cst_5 : f32 to vector<16x128xf32>
    %7 = arith.maximumf %5, %6 : vector<16x128xf32>
    %8 = arith.truncf %7 : vector<16x128xf32> to vector<16x128xbf16>
    %c0_6 = arith.constant 0 : index
    %c0_7 = arith.constant 0 : index
    %9 = vector.load %arg4[%c0_6, %c0_7] : memref<128x128xbf16, #tpu.memory_space<vmem>>, vector<128x128xbf16>
    %cst_8 = arith.constant dense<0.000000e+00> : vector<16x128xf32>
    %10 = tpu.matmul %8, %9, %cst_8 {dimension_numbers = #tpu.dot_dimension_numbers<[1], [0], [0], [1], [0, 0, 1, 1], [], []>} : vector<16x128xbf16>, vector<128x128xbf16>, vector<16x128xf32> -> vector<16x128xf32>
    %c0_9 = arith.constant 0 : index
    %c0_10 = arith.constant 0 : index
    %11 = vector.load %arg5[%c0_9, %c0_10] : memref<1x128xf32, #tpu.memory_space<vmem>>, vector<1x128xf32>
    %12 = vector.broadcast %11 : vector<1x128xf32> to vector<16x128xf32>
    %13 = arith.addf %10, %12 : vector<16x128xf32>
    %cst_11 = arith.constant 0.000000e+00 : f32
    %14 = vector.broadcast %cst_11 : f32 to vector<16x128xf32>
    %15 = arith.maximumf %13, %14 : vector<16x128xf32>
    %16 = arith.truncf %15 : vector<16x128xf32> to vector<16x128xbf16>
    %c0_12 = arith.constant 0 : index
    %c0_13 = arith.constant 0 : index
    %17 = vector.load %arg6[%c0_12, %c0_13] : memref<128x128xbf16, #tpu.memory_space<vmem>>, vector<128x128xbf16>
    %cst_14 = arith.constant dense<0.000000e+00> : vector<16x128xf32>
    %18 = tpu.matmul %16, %17, %cst_14 {dimension_numbers = #tpu.dot_dimension_numbers<[1], [0], [0], [1], [0, 0, 1, 1], [], []>} : vector<16x128xbf16>, vector<128x128xbf16>, vector<16x128xf32> -> vector<16x128xf32>
    %c0_15 = arith.constant 0 : index
    %c0_16 = arith.constant 0 : index
    %19 = vector.load %arg7[%c0_15, %c0_16] : memref<1x128xf32, #tpu.memory_space<vmem>>, vector<1x128xf32>
    %20 = vector.broadcast %19 : vector<1x128xf32> to vector<16x128xf32>
    %21 = arith.addf %18, %20 : vector<16x128xf32>
    %cst_17 = arith.constant 0.000000e+00 : f32
    %22 = vector.broadcast %cst_17 : f32 to vector<16x128xf32>
    %23 = arith.maximumf %21, %22 : vector<16x128xf32>
    %c0_18 = arith.constant 0 : index
    %c0_19 = arith.constant 0 : index
    %24 = vector.load %arg8[%c0_18, %c0_19] : memref<1x128xf32, #tpu.memory_space<vmem>>, vector<1x128xf32>
    %25 = vector.broadcast %24 : vector<1x128xf32> to vector<16x128xf32>
    %26 = arith.mulf %23, %25 : vector<16x128xf32>
    %cst_20 = arith.constant dense<0.000000e+00> : vector<16xf32>
    %27 = vector.multi_reduction <add>, %26, %cst_20 [1] : vector<16x128xf32> to vector<16xf32>
    %28 = vector.shape_cast %27 : vector<16xf32> to vector<16x1xf32>
    %c0_21 = arith.constant 0 : index
    %c0_22 = arith.constant 0 : index
    %29 = vector.load %arg9[%c0_21, %c0_22] : memref<1x1xf32, #tpu.memory_space<vmem>>, vector<1x1xf32>
    %30 = vector.broadcast %29 : vector<1x1xf32> to vector<16x1xf32>
    %31 = arith.addf %28, %30 : vector<16x1xf32>
    %c0_23 = arith.constant 0 : index
    %c0_24 = arith.constant 0 : index
    %32 = vector.load %arg10[%c0_23, %c0_24] : memref<16x1xf32, #tpu.memory_space<vmem>>, vector<16x1xf32>
    tpu.vector_store %arg10[%c0_23, %c0_24], %31 {strides = array<i32>} : memref<16x1xf32, #tpu.memory_space<vmem>>, vector<16x1xf32>,
    return
  }
  func.func @transform_0(%arg0: i32) -> (i32, i32) {
    %c0_i32 = arith.constant 0 : i32
    %c0_i32_0 = arith.constant 0 : i32
    return %arg0, %c0_i32 : i32, i32
  }
  func.func @transform_1(%arg0: i32) -> (i32, i32) {
    %c0_i32 = arith.constant 0 : i32
    %c0_i32_0 = arith.constant 0 : i32
    %c0_i32_1 = arith.constant 0 : i32
    return %c0_i32, %c0_i32_0 : i32, i32
  }
  func.func @transform_2(%arg0: i32) -> (i32, i32) {
    %c0_i32 = arith.constant 0 : i32
    %c0_i32_0 = arith.constant 0 : i32
    %c0_i32_1 = arith.constant 0 : i32
    return %c0_i32, %c0_i32_0 : i32, i32
  }
  func.func @transform_3(%arg0: i32) -> (i32, i32) {
    %c0_i32 = arith.constant 0 : i32
    %c0_i32_0 = arith.constant 0 : i32
    %c0_i32_1 = arith.constant 0 : i32
    return %c0_i32, %c0_i32_0 : i32, i32
  }
  func.func @transform_4(%arg0: i32) -> (i32, i32) {
    %c0_i32 = arith.constant 0 : i32
    %c0_i32_0 = arith.constant 0 : i32
    %c0_i32_1 = arith.constant 0 : i32
    return %c0_i32, %c0_i32_0 : i32, i32
  }
  func.func @transform_5(%arg0: i32) -> (i32, i32) {
    %c0_i32 = arith.constant 0 : i32
    %c0_i32_0 = arith.constant 0 : i32
    %c0_i32_1 = arith.constant 0 : i32
    return %c0_i32, %c0_i32_0 : i32, i32
  }
  func.func @transform_6(%arg0: i32) -> (i32, i32) {
    %c0_i32 = arith.constant 0 : i32
    %c0_i32_0 = arith.constant 0 : i32
    %c0_i32_1 = arith.constant 0 : i32
    return %c0_i32, %c0_i32_0 : i32, i32
  }
  func.func @transform_7(%arg0: i32) -> (i32, i32) {
    %c0_i32 = arith.constant 0 : i32
    %c0_i32_0 = arith.constant 0 : i32
    %c0_i32_1 = arith.constant 0 : i32
    return %c0_i32, %c0_i32_0 : i32, i32
  }
  func.func @transform_8(%arg0: i32) -> (i32, i32) {
    %c0_i32 = arith.constant 0 : i32
    %c0_i32_0 = arith.constant 0 : i32
    %c0_i32_1 = arith.constant 0 : i32
    return %c0_i32, %c0_i32_0 : i32, i32
  }
  func.func @transform_9(%arg0: i32) -> (i32, i32) {
    %c0_i32 = arith.constant 0 : i32
    %c0_i32_0 = arith.constant 0 : i32
    return %arg0, %c0_i32 : i32, i32
  }
}

</mosaic_0001>

<llo_original>
// kernel: base_reward_forward.1
$region0: #{base_reward_forward.1}
  #allocation0 [shape = 'u32[]', space=smem, size = 0x4, offset = 0x4, fixed_abs, tag = 'smem constant byte address 0x4 - core index']
  #allocation1 [shape = 'u32[144,128]{1,0:T(1,128)}', space=vmem, size = 0x12000, scoped, tag = 'internal scratch']
  #allocation2 [shape = 'f32[1,1]{1,0:T(1,128)S(1)}', space=vmem, size = 0x200, scoped, tag = 'scoped memory for base_reward_forward.1']
  %s0 = inlined_call_operand.vmem [shape: bf16[16,16], index: 0, kind: input, shape index: {}]
  %s1 = inlined_call_operand.vmem [shape: bf16[16,128], index: 1, kind: input, shape index: {}]
  %s2 = inlined_call_operand.vmem [shape: f32[1,128], index: 2, kind: input, shape index: {}]
  %s3 = inlined_call_operand.vmem [shape: bf16[128,128], index: 3, kind: input, shape index: {}]
  %s4 = inlined_call_operand.vmem [shape: f32[1,128], index: 4, kind: input, shape index: {}]
  %s5 = inlined_call_operand.vmem [shape: bf16[128,128], index: 5, kind: input, shape index: {}]
  %s6 = inlined_call_operand.vmem [shape: f32[1,128], index: 6, kind: input, shape index: {}]
  %s7 = inlined_call_operand.vmem [shape: f32[1,128], index: 7, kind: input, shape index: {}]
  %s8 = inlined_call_operand.<no memory space> [shape: f32[1,1], index: 8, kind: input, shape index: {}]
  %s9 = inlined_call_operand.vmem [shape: f32[16,1], index: 9, kind: output, shape index: {}]
  %s10 = sld [smem:[#allocation0]]
  $region46: #{base_reward_forward.1} parent=0
    _
  %s12 = ssub.s32 1, %s10
  %s13 = scalar_select 0, %s12, %s10
  %v14 = vstv %s8
  %15 = vst [vmem:[#allocation2] sm:$0x1] %v14
  // Predicated region
  $region2: #{base_reward_forward.1} parent=0 // pred_check
    _
  $region3: #{base_reward_forward.1} parent=0 // pred_check_branch
    %17 = sbr.rel (0) target = $region5
  $region4: #{base_reward_forward.1} parent=0 // pred_region
    _
  $region5: #{base_reward_forward.1} parent=0 // pred_fallthru
    _
  // Predicated region
  $region6: #{base_reward_forward.1} parent=0 // pred_check
    _
  $region7: #{base_reward_forward.1} parent=0 // pred_check_branch
    %19 = sbr.rel (0) target = $region9
  $region8: #{base_reward_forward.1} parent=0 // pred_region
    _
  $region9: #{base_reward_forward.1} parent=0 // pred_fallthru
    _
  // Predicated region
  $region10: #{base_reward_forward.1} parent=0 // pred_check
    _
  $region11: #{base_reward_forward.1} parent=0 // pred_check_branch
    %21 = sbr.rel (0) target = $region13
  $region12: #{base_reward_forward.1} parent=0 // pred_region
    _
  $region13: #{base_reward_forward.1} parent=0 // pred_fallthru
    _
  // Predicated region
  $region14: #{base_reward_forward.1} parent=0 // pred_check
    _
  $region15: #{base_reward_forward.1} parent=0 // pred_check_branch
    %23 = sbr.rel (0) target = $region17
  $region16: #{base_reward_forward.1} parent=0 // pred_region
    _
  $region17: #{base_reward_forward.1} parent=0 // pred_fallthru
    _
  // Predicated region
  $region18: #{base_reward_forward.1} parent=0 // pred_check
    _
  $region19: #{base_reward_forward.1} parent=0 // pred_check_branch
    %25 = sbr.rel (0) target = $region21
  $region20: #{base_reward_forward.1} parent=0 // pred_region
    _
  $region21: #{base_reward_forward.1} parent=0 // pred_fallthru
    _
  // Predicated region
  $region22: #{base_reward_forward.1} parent=0 // pred_check
    _
  $region23: #{base_reward_forward.1} parent=0 // pred_check_branch
    %27 = sbr.rel (0) target = $region25
  $region24: #{base_reward_forward.1} parent=0 // pred_region
    _
  $region25: #{base_reward_forward.1} parent=0 // pred_fallthru
    _
  // Predicated region
  $region26: #{base_reward_forward.1} parent=0 // pred_check
    _
  $region27: #{base_reward_forward.1} parent=0 // pred_check_branch
    %29 = sbr.rel (0) target = $region29
  $region28: #{base_reward_forward.1} parent=0 // pred_region
    _
  $region29: #{base_reward_forward.1} parent=0 // pred_fallthru
    _
  // Predicated region
  $region30: #{base_reward_forward.1} parent=0 // pred_check
    _
  $region31: #{base_reward_forward.1} parent=0 // pred_check_branch
    %31 = sbr.rel (0) target = $region33
  $region32: #{base_reward_forward.1} parent=0 // pred_region
    _
  $region33: #{base_reward_forward.1} parent=0 // pred_fallthru
    _
  // Predicated region
  $region34: #{base_reward_forward.1} parent=0 // pred_check
    _
  $region35: #{base_reward_forward.1} parent=0 // pred_check_branch
    %33 = sbr.rel (0) target = $region37
  $region36: #{base_reward_forward.1} parent=0 // pred_region
    _
  $region37: #{base_reward_forward.1} parent=0 // pred_fallthru
    _
  %v35 = vld [vmem:[%s0] sm:$0xf]
  %v36 = vld [vmem:[%s0 + $0x4] sm:$0xf]
  %v37 = vld [vmem:[%s1] sm:$0xf]
  %v38 = vld [vmem:[%s1 + $0x4] sm:$0xf]
  %v39 = vld [vmem:[%s2] sm:$0x1]
  %v41 = vlaneseq
  %v42 = vshrl.u32 %v41, 7
  %v43 = vsub.s32 0, %v42
  %v44 = vrot.slane %v39, %v43
  %v48 = vunpack.c.l.b16 %v35
  %v49 = vunpack.c.l.b16 %v36
  %v50 = vpack.c.b16 %v49, %v48
  %v53 = vunpack.c.l.b16 %v37
  %v54 = vunpack.c.l.b16 %v38
  %v55 = vpack.c.b16 %v54, %v53
  %vm57 = vcmask 130048
  %v59 = vsel %vm57, %v50, 0
  %61 = vmatprep.subr.bf16.mxu0 0
  %62 = vmatpush1.bf16.msra.mxu0 %v55
  %63 = vmatprep.subr.bf16.mxu0 0
  %64 = vmatpush1.bf16.msra.mxu0 0
  %65 = vmatprep.subr.bf16.mxu0 0
  %66 = vmatpush1.bf16.msra.mxu0 0
  %67 = vmatprep.subr.bf16.mxu0 0
  %68 = vmatpush1.bf16.msra.mxu0 0
  %69 = vmatprep.subr.bf16.mxu0 0
  %70 = vmatpush1.bf16.msra.mxu0 0
  %71 = vmatprep.subr.bf16.mxu0 0
  %72 = vmatpush1.bf16.msra.mxu0 0
  %73 = vmatprep.subr.bf16.mxu0 0
  %74 = vmatpush1.bf16.msra.mxu0 0
  %75 = vmatprep.subr.bf16.mxu0 0
  %76 = vmatpush1.bf16.msra.mxu0 0
  %77 = vmatprep.subr.bf16.mxu0 0
  %78 = vmatpush1.bf16.msra.mxu0 0
  %79 = vmatprep.subr.bf16.mxu0 0
  %80 = vmatpush1.bf16.msra.mxu0 0
  %81 = vmatprep.subr.bf16.mxu0 0
  %82 = vmatpush1.bf16.msra.mxu0 0
  %83 = vmatprep.subr.bf16.mxu0 0
  %84 = vmatpush1.bf16.msra.mxu0 0
  %85 = vmatprep.subr.bf16.mxu0 0
  %86 = vmatpush1.bf16.msra.mxu0 0
  %87 = vmatprep.subr.bf16.mxu0 0
  %88 = vmatpush1.bf16.msra.mxu0 0
  %89 = vmatprep.subr.bf16.mxu0 0
  %90 = vmatpush1.bf16.msra.mxu0 0
  %91 = vmatprep.subr.bf16.mxu0 0
  %92 = vmatpush1.bf16.msra.mxu0 0
  %93 = vmatprep.mubr.bf16.mxu0 0
  %94 = vmatmul.mubr.bf16.gmra.mrb[0].mxu0 %v59
  %v95 = vpop.f32.mrb[0].mxu0
  %v96 = vadd.f32 %v44, %v95
  %v97 = vpop.f32.mrb[0].mxu0
  %v98 = vpop.f32.mrb[0].mxu0
  %v99 = vadd.f32 %v44, %v98
  %v100 = vpop.f32.mrb[0].mxu0
  %101 = vdwg.mxu0
  %v102 = vmax.f32 %v96, 0.0
  %v103 = vmax.f32 %v99, 0.0
  %v104 = vpack.c.bf16 %v103, %v102
  %v105 = vld [vmem:[%s3] sm:$0xf]
  %v106 = vld [vmem:[%s3 + $0x4] sm:$0xf]
  %v107 = vld [vmem:[%s3 + $0x8] sm:$0xf]
  %v108 = vld [vmem:[%s3 + $0xc] sm:$0xf]
  %v109 = vld [vmem:[%s3 + $0x10] sm:$0xf]
  %v110 = vld [vmem:[%s3 + $0x14] sm:$0xf]
  %v111 = vld [vmem:[%s3 + $0x18] sm:$0xf]
  %v112 = vld [vmem:[%s3 + $0x1c] sm:$0xf]
  %v113 = vld [vmem:[%s3 + $0x20] sm:$0xf]
  %v114 = vld [vmem:[%s3 + $0x24] sm:$0xf]
  %v115 = vld [vmem:[%s3 + $0x28] sm:$0xf]
  %v116 = vld [vmem:[%s3 + $0x2c] sm:$0xf]
  %v117 = vld [vmem:[%s3 + $0x30] sm:$0xf]
  %v118 = vld [vmem:[%s3 + $0x34] sm:$0xf]
  %v119 = vld [vmem:[%s3 + $0x38] sm:$0xf]
  %v120 = vld [vmem:[%s3 + $0x3c] sm:$0xf]
  %v121 = vld [vmem:[%s4] sm:$0x1]
  %v123 = vlaneseq
  %v124 = vshrl.u32 %v123, 7
  %v125 = vsub.s32 0, %v124
  %v126 = vrot.slane %v121, %v125
  %v144 = vunpack.c.l.b16 %v105
  %v145 = vunpack.c.l.b16 %v106
  %v146 = vunpack.c.l.b16 %v107
  %v147 = vunpack.c.l.b16 %v108
  %v148 = vunpack.c.l.b16 %v109
  %v149 = vunpack.c.l.b16 %v110
  %v150 = vunpack.c.l.b16 %v111
  %v151 = vunpack.c.l.b16 %v112
  %v152 = vunpack.c.l.b16 %v113
  %v153 = vunpack.c.l.b16 %v114
  %v154 = vunpack.c.l.b16 %v115
  %v155 = vunpack.c.l.b16 %v116
  %v156 = vunpack.c.l.b16 %v117
  %v157 = vunpack.c.l.b16 %v118
  %v158 = vunpack.c.l.b16 %v119
  %v159 = vunpack.c.l.b16 %v120
  %v160 = vpack.c.b16 %v145, %v144
  %v161 = vpack.c.b16 %v147, %v146
  %v162 = vpack.c.b16 %v149, %v148
  %v163 = vpack.c.b16 %v151, %v150
  %v164 = vpack.c.b16 %v153, %v152
  %v165 = vpack.c.b16 %v155, %v154
  %v166 = vpack.c.b16 %v157, %v156
  %v167 = vpack.c.b16 %v159, %v158
  %176 = vmatprep.subr.bf16.mxu0 0
  %177 = vmatpush1.bf16.msra.mxu0 %v160
  %178 = vmatprep.subr.bf16.mxu0 0
  %179 = vmatpush1.bf16.msra.mxu0 %v161
  %180 = vmatprep.subr.bf16.mxu0 0
  %181 = vmatpush1.bf16.msra.mxu0 %v162
  %182 = vmatprep.subr.bf16.mxu0 0
  %183 = vmatpush1.bf16.msra.mxu0 %v163
  %184 = vmatprep.subr.bf16.mxu0 0
  %185 = vmatpush1.bf16.msra.mxu0 %v164
  %186 = vmatprep.subr.bf16.mxu0 0
  %187 = vmatpush1.bf16.msra.mxu0 %v165
  %188 = vmatprep.subr.bf16.mxu0 0
  %189 = vmatpush1.bf16.msra.mxu0 %v166
  %190 = vmatprep.subr.bf16.mxu0 0
  %191 = vmatpush1.bf16.msra.mxu0 %v167
  %192 = vmatprep.subr.bf16.mxu0 0
  %193 = vmatpush1.bf16.msra.mxu0 0
  %194 = vmatprep.subr.bf16.mxu0 0
  %195 = vmatpush1.bf16.msra.mxu0 0
  %196 = vmatprep.subr.bf16.mxu0 0
  %197 = vmatpush1.bf16.msra.mxu0 0
  %198 = vmatprep.subr.bf16.mxu0 0
  %199 = vmatpush1.bf16.msra.mxu0 0
  %200 = vmatprep.subr.bf16.mxu0 0
  %201 = vmatpush1.bf16.msra.mxu0 0
  %202 = vmatprep.subr.bf16.mxu0 0
  %203 = vmatpush1.bf16.msra.mxu0 0
  %204 = vmatprep.subr.bf16.mxu0 0
  %205 = vmatpush1.bf16.msra.mxu0 0
  %206 = vmatprep.subr.bf16.mxu0 0
  %207 = vmatpush1.bf16.msra.mxu0 0
  %208 = vmatprep.mubr.bf16.mxu0 0
  %209 = vmatmul.mubr.bf16.gmra.mrb[0].mxu0 %v104
  %v210 = vpop.f32.mrb[0].mxu0
  %v211 = vadd.f32 %v126, %v210
  %v212 = vpop.f32.mrb[0].mxu0
  %v213 = vpop.f32.mrb[0].mxu0
  %v214 = vadd.f32 %v126, %v213
  %v215 = vpop.f32.mrb[0].mxu0
  %216 = vdwg.mxu0
  %v217 = vmax.f32 %v211, 0.0
  %v218 = vmax.f32 %v214, 0.0
  %v219 = vpack.c.bf16 %v218, %v217
  %v220 = vld [vmem:[%s5] sm:$0xf]
  %v221 = vld [vmem:[%s5 + $0x4] sm:$0xf]
  %v222 = vld [vmem:[%s5 + $0x8] sm:$0xf]
  %v223 = vld [vmem:[%s5 + $0xc] sm:$0xf]
  %v224 = vld [vmem:[%s5 + $0x10] sm:$0xf]
  %v225 = vld [vmem:[%s5 + $0x14] sm:$0xf]
  %v226 = vld [vmem:[%s5 + $0x18] sm:$0xf]
  %v227 = vld [vmem:[%s5 + $0x1c] sm:$0xf]
  %v228 = vld [vmem:[%s5 + $0x20] sm:$0xf]
  %v229 = vld [vmem:[%s5 + $0x24] sm:$0xf]
  %v230 = vld [vmem:[%s5 + $0x28] sm:$0xf]
  %v231 = vld [vmem:[%s5 + $0x2c] sm:$0xf]
  %v232 = vld [vmem:[%s5 + $0x30] sm:$0xf]
  %v233 = vld [vmem:[%s5 + $0x34] sm:$0xf]
  %v234 = vld [vmem:[%s5 + $0x38] sm:$0xf]
  %v235 = vld [vmem:[%s5 + $0x3c] sm:$0xf]
  %v236 = vld [vmem:[%s6] sm:$0x1]
  %v238 = vlaneseq
  %v239 = vshrl.u32 %v238, 7
  %v240 = vsub.s32 0, %v239
  %v241 = vrot.slane %v236, %v240
  %v259 = vunpack.c.l.b16 %v220
  %v260 = vunpack.c.l.b16 %v221
  %v261 = vunpack.c.l.b16 %v222
  %v262 = vunpack.c.l.b16 %v223
  %v263 = vunpack.c.l.b16 %v224
  %v264 = vunpack.c.l.b16 %v225
  %v265 = vunpack.c.l.b16 %v226
  %v266 = vunpack.c.l.b16 %v227
  %v267 = vunpack.c.l.b16 %v228
  %v268 = vunpack.c.l.b16 %v229
  %v269 = vunpack.c.l.b16 %v230
  %v270 = vunpack.c.l.b16 %v231
  %v271 = vunpack.c.l.b16 %v232
  %v272 = vunpack.c.l.b16 %v233
  %v273 = vunpack.c.l.b16 %v234
  %v274 = vunpack.c.l.b16 %v235
  %v275 = vpack.c.b16 %v260, %v259
  %v276 = vpack.c.b16 %v262, %v261
  %v277 = vpack.c.b16 %v264, %v263
  %v278 = vpack.c.b16 %v266, %v265
  %v279 = vpack.c.b16 %v268, %v267
  %v280 = vpack.c.b16 %v270, %v269
  %v281 = vpack.c.b16 %v272, %v271
  %v282 = vpack.c.b16 %v274, %v273
  %291 = vmatprep.subr.bf16.mxu0 0
  %292 = vmatpush1.bf16.msra.mxu0 %v275
  %293 = vmatprep.subr.bf16.mxu0 0
  %294 = vmatpush1.bf16.msra.mxu0 %v276
  %295 = vmatprep.subr.bf16.mxu0 0
  %296 = vmatpush1.bf16.msra.mxu0 %v277
  %297 = vmatprep.subr.bf16.mxu0 0
  %298 = vmatpush1.bf16.msra.mxu0 %v278
  %299 = vmatprep.subr.bf16.mxu0 0
  %300 = vmatpush1.bf16.msra.mxu0 %v279
  %301 = vmatprep.subr.bf16.mxu0 0
  %302 = vmatpush1.bf16.msra.mxu0 %v280
  %303 = vmatprep.subr.bf16.mxu0 0
  %304 = vmatpush1.bf16.msra.mxu0 %v281
  %305 = vmatprep.subr.bf16.mxu0 0
  %306 = vmatpush1.bf16.msra.mxu0 %v282
  %307 = vmatprep.subr.bf16.mxu0 0
  %308 = vmatpush1.bf16.msra.mxu0 0
  %309 = vmatprep.subr.bf16.mxu0 0
  %310 = vmatpush1.bf16.msra.mxu0 0
  %311 = vmatprep.subr.bf16.mxu0 0
  %312 = vmatpush1.bf16.msra.mxu0 0
  %313 = vmatprep.subr.bf16.mxu0 0
  %314 = vmatpush1.bf16.msra.mxu0 0
  %315 = vmatprep.subr.bf16.mxu0 0
  %316 = vmatpush1.bf16.msra.mxu0 0
  %317 = vmatprep.subr.bf16.mxu0 0
  %318 = vmatpush1.bf16.msra.mxu0 0
  %319 = vmatprep.subr.bf16.mxu0 0
  %320 = vmatpush1.bf16.msra.mxu0 0
  %321 = vmatprep.subr.bf16.mxu0 0
  %322 = vmatpush1.bf16.msra.mxu0 0
  %323 = vmatprep.mubr.bf16.mxu0 0
  %324 = vmatmul.mubr.bf16.gmra.mrb[0].mxu0 %v219
  %v325 = vpop.f32.mrb[0].mxu0
  %v326 = vadd.f32 %v241, %v325
  %v327 = vpop.f32.mrb[0].mxu0
  %v328 = vpop.f32.mrb[0].mxu0
  %v329 = vadd.f32 %v241, %v328
  %v330 = vpop.f32.mrb[0].mxu0
  %331 = vdwg.mxu0
  %v332 = vmax.f32 %v326, 0.0
  %v333 = vmax.f32 %v329, 0.0
  %v334 = vld [vmem:[%s7] sm:$0x1]
  %v336 = vlaneseq
  %v337 = vshrl.u32 %v336, 7
  %v338 = vsub.s32 0, %v337
  %v339 = vrot.slane %v334, %v338
  %v341 = vmul.f32 %v332, %v339
  %v342 = vmul.f32 %v333, %v339
  %343 = vadd.xlane.f32.xlu0 %v341
  %v344 = vpop.xlane.xlu0 %343
  %345 = vadd.xlane.f32.xlu0 %v342
  %v346 = vpop.xlane.xlu0 %345
  %v347 = vld [vmem:[#allocation2] sm:$0x1]
  %v349 = vlaneseq
  %v350 = vshrl.u32 %v349, 7
  %v351 = vsub.s32 0, %v350
  %v352 = vrot.slane %v347, %v351
  %v354 = vadd.f32 %v344, %v352
  %v355 = vadd.f32 %v346, %v352
  %vm356 = vcmask 7168
  %357 = vst.msk [vmem:[%s9] sm:$0xff] %vm356, %v354
  %358 = vst.msk [vmem:[%s9 + $0x8] sm:$0xff] %vm356, %v355
  // Predicated region
  $region38: #{base_reward_forward.1} parent=0 // pred_check
    _
  $region39: #{base_reward_forward.1} parent=0 // pred_check_branch
    %360 = sbr.rel (0) target = $region41
  $region40: #{base_reward_forward.1} parent=0 // pred_region
    _
  $region41: #{base_reward_forward.1} parent=0 // pred_fallthru
    _
  // Predicated region
  $region42: #{base_reward_forward.1} parent=0 // pred_check
    _
  $region43: #{base_reward_forward.1} parent=0 // pred_check_branch
    %362 = sbr.rel (0) target = $region45
  $region44: #{base_reward_forward.1} parent=0 // pred_region
    _
  $region45: #{base_reward_forward.1} parent=0 // pred_fallthru
    _

</llo_original>
